<compile_context>
chip_gen: v7x
topology: tpu7x:2x2x1
jax: 0.10.0
libtpu: 0.0.40
codegen_flags: <defaults>
</compile_context>

<pallas_src>
import math
import functools

import jax
import jax.numpy as jnp
from jax.experimental import pallas as pl
from jax.experimental.pallas import tpu as pltpu


def bert_embedding_kernel(ids_ref,       # SMEM (B, S) int32   [scalar prefetch]
                          seg_ref,       # VMEM (1, S, 1) int32
                          tok_hbm_ref,   # HBM  (V, E) f32     [memory_space=ANY]
                          seg_tab_ref,   # VMEM (NSEG, E) f32
                          pos_ref,       # VMEM (S, E) f32
                          gamma_ref,     # VMEM (1, E) f32
                          beta_ref,      # VMEM (1, E) f32
                          out_ref,       # VMEM (1, S, E) f32
                          tok_buf,       # VMEM scratch (S, E) f32
                          copy_sem,      # DMA semaphores (S,)
                          *, eps):
    S, E = pos_ref.shape
    V = tok_hbm_ref.shape[0]
    b = pl.program_id(0)

    # --- 1) Token embedding: DMA row gather from HBM -------------------------
    # Issue all S row copies up front (each with its own semaphore) so they
    # overlap each other and the segment/positional compute below.
    copies = []
    for s in range(S):
        tok_id = jnp.clip(ids_ref[b, s], 0, V - 1)   # guard out-of-range ids
        cp = pltpu.make_async_copy(
            tok_hbm_ref.at[pl.ds(tok_id, 1), :],
            tok_buf.at[pl.ds(s, 1), :],
            copy_sem.at[s])
        cp.start()
        copies.append(cp)

    # --- 2) Segment embedding: VPU selects (vocab is only {0, 1, 2}) ---------
    # Segment labels are a handful of ints; the (S, 1) layout cost is negligible.
    segs = seg_ref[0]                                # (S, 1) int32
    seg_tab = seg_tab_ref[...]                       # (NSEG, E)
    seg_emb = ((segs == 0).astype(jnp.float32) * seg_tab[0:1, :]
               + (segs == 1).astype(jnp.float32) * seg_tab[1:2, :]
               + (segs == 2).astype(jnp.float32) * seg_tab[2:3, :])   # (S, E)

    base = seg_emb + pos_ref[...]                    # (S, E); overlaps with DMAs

    for cp in copies:
        cp.wait()

    x = tok_buf[...] + base                          # (S, E)

    # --- 3) LayerNorm: gamma * (x - mean) / (std + eps) + beta ---------------
    # (unbiased std, eps outside sqrt, as in codertimo/BERT-pytorch.)
    mean = jnp.mean(x, axis=-1, keepdims=True)
    xc = x - mean
    var = jnp.sum(xc * xc, axis=-1, keepdims=True) * (1.0 / (E - 1))
    inv = pl.reciprocal(jnp.sqrt(var) + eps, approx=False)   # EUP path, then multiply
    y = gamma_ref[...] * (xc * inv) + beta_ref[...]

    # --- 4) Dropout: eval-mode identity --------------------------------------
    out_ref[0] = y.astype(out_ref.dtype)


def bert_embedding(sequence, segment_label, tok_table, seg_table, pos_enc,
                   gamma, beta, *, eps=1e-6):
    B, S = sequence.shape
    V, E = tok_table.shape
    NSEG = seg_table.shape[0]

    ids = sequence.astype(jnp.int32)                         # (B, S) -> SMEM prefetch
    segs = segment_label.astype(jnp.int32).reshape(B, S, 1)  # (B, S, 1)
    gamma2 = gamma.reshape(1, E).astype(jnp.float32)
    beta2 = beta.reshape(1, E).astype(jnp.float32)

    kernel = functools.partial(bert_embedding_kernel, eps=eps)

    grid_spec = pltpu.PrefetchScalarGridSpec(
        num_scalar_prefetch=1,               # ids -> SMEM, visible to index_maps/kernel
        grid=(B,),                           # one full (S, E) sequence slab per step
        in_specs=[
            pl.BlockSpec((1, S, 1), lambda b, ids: (b, 0, 0)),    # segment labels
            pl.BlockSpec(memory_space=pl.ANY),                    # token table (HBM)
            pl.BlockSpec((NSEG, E), lambda b, ids: (0, 0)),       # segment table
            pl.BlockSpec((S, E), lambda b, ids: (0, 0)),          # positional enc
            pl.BlockSpec((1, E), lambda b, ids: (0, 0)),          # layernorm gamma
            pl.BlockSpec((1, E), lambda b, ids: (0, 0)),          # layernorm beta
        ],
        out_specs=pl.BlockSpec((1, S, E), lambda b, ids: (b, 0, 0)),
        scratch_shapes=[
            pltpu.VMEM((S, E), jnp.float32),      # gathered token rows
            pltpu.SemaphoreType.DMA((S,)),        # one sem per in-flight row copy
        ],
    )

    return pl.pallas_call(
        kernel,
        out_shape=jax.ShapeDtypeStruct((B, S, E), jnp.float32),
        grid_spec=grid_spec,
        compiler_params=pltpu.CompilerParams(
            dimension_semantics=("parallel",)),   # megacore-shard the batch axis
    )(ids, segs, tok_table, seg_table, pos_enc, gamma2, beta2)


def sinusoidal_positional_encoding(max_len, d_model):
    position = jnp.arange(max_len, dtype=jnp.float32)[:, None]
    div_term = jnp.exp(jnp.arange(0, d_model, 2, dtype=jnp.float32)
                       * -(math.log(10000.0) / d_model))
    pe = jnp.zeros((max_len, d_model), jnp.float32)
    pe = pe.at[:, 0::2].set(jnp.sin(position * div_term))
    pe = pe.at[:, 1::2].set(jnp.cos(position * div_term))
    return pe


def _reference(sequence, segment_label, tok_table, seg_table, pos_enc,
               gamma, beta, eps=1e-6):
    tok = tok_table[sequence]                       # (B, S, E)
    seg = seg_table[segment_label]                  # (B, S, E)
    x = tok + seg + pos_enc[None, :, :]
    mean = jnp.mean(x, axis=-1, keepdims=True)
    xc = x - mean
    var = jnp.sum(xc * xc, axis=-1, keepdims=True) / (x.shape[-1] - 1)
    std = jnp.sqrt(var)
    return gamma * xc / (std + eps) + beta


if __name__ == "__main__":
    B, S, V, E = 2, 8, 64, 128     # E chosen lane-dense (multiple of 128)
    NSEG = 8                       # segment vocab is 3; padded to 8 sublane rows

    key = jax.random.PRNGKey(0)
    k1, k2, k3, k4 = jax.random.split(key, 4)

    # nn.Embedding default init ~ N(0,1); padding_idx=0 rows zeroed.
    tok_table = jax.random.normal(k1, (V, E), jnp.float32).at[0].set(0.0)
    seg_table = jnp.zeros((NSEG, E), jnp.float32).at[1:3].set(
        jax.random.normal(k2, (2, E), jnp.float32))
    pos_enc = sinusoidal_positional_encoding(S, E)
    gamma = jnp.ones((E,), jnp.float32)
    beta = jnp.zeros((E,), jnp.float32)

    sequence = jax.random.randint(k3, (B, S), 0, V, dtype=jnp.int32)
    segment_label = jax.random.randint(k4, (B, S), 0, 3, dtype=jnp.int32)

    out = bert_embedding(sequence, segment_label, tok_table, seg_table,
                         pos_enc, gamma, beta)
    jax.block_until_ready(out)

    ref = _reference(sequence, segment_label, tok_table, seg_table,
                     pos_enc, gamma, beta)
    assert jnp.allclose(out, ref, atol=1e-5, rtol=1e-5), "mismatch vs reference"

    print("KERNEL_OK")
</pallas_src>

<mosaic_0001>
module attributes {stable_mosaic.version = 11 : i64} {
  func.func @bert_embedding_kernel(%arg0: i32, %arg1: memref<2x8xi32, #tpu.memory_space<smem>>, %arg2: memref<1x8x1xi32, #tpu.memory_space<vmem>>, %arg3: memref<64x128xf32, #tpu.memory_space<any>>, %arg4: memref<8x128xf32, #tpu.memory_space<vmem>>, %arg5: memref<8x128xf32, #tpu.memory_space<vmem>>, %arg6: memref<1x128xf32, #tpu.memory_space<vmem>>, %arg7: memref<1x128xf32, #tpu.memory_space<vmem>>, %arg8: memref<1x8x128xf32, #tpu.memory_space<vmem>>, %arg9: memref<8x128xf32, #tpu.memory_space<vmem>>, %arg10: memref<8x!tpu.dma_semaphore, #tpu.memory_space<semaphore_mem>>) attributes {dimension_semantics = [#tpu.dimension_semantics<parallel>], iteration_bounds = array<i64: 2>, scalar_prefetch = 1 : i64, scratch_operands = 2 : i64, tpu.core_type = #tpu.core_type<tc>, window_params = [{transform_indices = @transform_0, window_bounds = array<i64: 1, 8, 1>}, {}, {pipeline_mode = #tpu.pipeline_mode<synchronous>, transform_indices = @transform_2, window_bounds = array<i64: 8, 128>}, {pipeline_mode = #tpu.pipeline_mode<synchronous>, transform_indices = @transform_3, window_bounds = array<i64: 8, 128>}, {pipeline_mode = #tpu.pipeline_mode<synchronous>, transform_indices = @transform_4, window_bounds = array<i64: 1, 128>}, {pipeline_mode = #tpu.pipeline_mode<synchronous>, transform_indices = @transform_5, window_bounds = array<i64: 1, 128>}, {transform_indices = @transform_6, window_bounds = array<i64: 1, 8, 128>}]} {
    %0 = arith.index_cast %arg0 : i32 to index
    %c0 = arith.constant 0 : index
    %1 = memref.load %arg1[%0, %c0] : memref<2x8xi32, #tpu.memory_space<smem>>
    %c0_i32 = arith.constant 0 : i32
    %c63_i32 = arith.constant 63 : i32
    %2 = arith.maxsi %c0_i32, %1 : i32
    %3 = arith.minsi %c63_i32, %2 : i32
    %c0_i32_0 = arith.constant 0 : i32
    %c0_i32_1 = arith.constant 0 : i32
    %4 = tpu.memref_slice %arg3[%3, %c0_i32_1] : memref<64x128xf32, #tpu.memory_space<any>> -> memref<1x128xf32, #tpu.memory_space<any>>
    %c0_i32_2 = arith.constant 0 : i32
    %c0_i32_3 = arith.constant 0 : i32
    %5 = tpu.memref_slice %arg9[%c0_i32_2, %c0_i32_3] : memref<8x128xf32, #tpu.memory_space<vmem>> -> memref<1x128xf32, #tpu.memory_space<vmem>>
    %6 = tpu.memref_slice %arg10[%c0_i32_0] : memref<8x!tpu.dma_semaphore, #tpu.memory_space<semaphore_mem>> -> memref<1x!tpu.dma_semaphore, #tpu.memory_space<semaphore_mem>>
    %7 = tpu.memref_squeeze %6 : memref<1x!tpu.dma_semaphore, #tpu.memory_space<semaphore_mem>> -> memref<!tpu.dma_semaphore, #tpu.memory_space<semaphore_mem>>
    tpu.enqueue_dma source(%4 : memref<1x128xf32, #tpu.memory_space<any>>) target(%5 : memref<1x128xf32, #tpu.memory_space<vmem>>) target_semaphore(%7 : memref<!tpu.dma_semaphore, #tpu.memory_space<semaphore_mem>>)
    %8 = arith.index_cast %arg0 : i32 to index
    %c1 = arith.constant 1 : index
    %9 = memref.load %arg1[%8, %c1] : memref<2x8xi32, #tpu.memory_space<smem>>
    %c0_i32_4 = arith.constant 0 : i32
    %c63_i32_5 = arith.constant 63 : i32
    %10 = arith.maxsi %c0_i32_4, %9 : i32
    %11 = arith.minsi %c63_i32_5, %10 : i32
    %c1_i32 = arith.constant 1 : i32
    %c0_i32_6 = arith.constant 0 : i32
    %12 = tpu.memref_slice %arg3[%11, %c0_i32_6] : memref<64x128xf32, #tpu.memory_space<any>> -> memref<1x128xf32, #tpu.memory_space<any>>
    %c1_i32_7 = arith.constant 1 : i32
    %c0_i32_8 = arith.constant 0 : i32
    %13 = tpu.memref_slice %arg9[%c1_i32_7, %c0_i32_8] : memref<8x128xf32, #tpu.memory_space<vmem>> -> memref<1x128xf32, #tpu.memory_space<vmem>>
    %14 = tpu.memref_slice %arg10[%c1_i32] : memref<8x!tpu.dma_semaphore, #tpu.memory_space<semaphore_mem>> -> memref<1x!tpu.dma_semaphore, #tpu.memory_space<semaphore_mem>>
    %15 = tpu.memref_squeeze %14 : memref<1x!tpu.dma_semaphore, #tpu.memory_space<semaphore_mem>> -> memref<!tpu.dma_semaphore, #tpu.memory_space<semaphore_mem>>
    tpu.enqueue_dma source(%12 : memref<1x128xf32, #tpu.memory_space<any>>) target(%13 : memref<1x128xf32, #tpu.memory_space<vmem>>) target_semaphore(%15 : memref<!tpu.dma_semaphore, #tpu.memory_space<semaphore_mem>>)
    %16 = arith.index_cast %arg0 : i32 to index
    %c2 = arith.constant 2 : index
    %17 = memref.load %arg1[%16, %c2] : memref<2x8xi32, #tpu.memory_space<smem>>
    %c0_i32_9 = arith.constant 0 : i32
    %c63_i32_10 = arith.constant 63 : i32
    %18 = arith.maxsi %c0_i32_9, %17 : i32
    %19 = arith.minsi %c63_i32_10, %18 : i32
    %c2_i32 = arith.constant 2 : i32
    %c0_i32_11 = arith.constant 0 : i32
    %20 = tpu.memref_slice %arg3[%19, %c0_i32_11] : memref<64x128xf32, #tpu.memory_space<any>> -> memref<1x128xf32, #tpu.memory_space<any>>
    %c2_i32_12 = arith.constant 2 : i32
    %c0_i32_13 = arith.constant 0 : i32
    %21 = tpu.memref_slice %arg9[%c2_i32_12, %c0_i32_13] : memref<8x128xf32, #tpu.memory_space<vmem>> -> memref<1x128xf32, #tpu.memory_space<vmem>>
    %22 = tpu.memref_slice %arg10[%c2_i32] : memref<8x!tpu.dma_semaphore, #tpu.memory_space<semaphore_mem>> -> memref<1x!tpu.dma_semaphore, #tpu.memory_space<semaphore_mem>>
    %23 = tpu.memref_squeeze %22 : memref<1x!tpu.dma_semaphore, #tpu.memory_space<semaphore_mem>> -> memref<!tpu.dma_semaphore, #tpu.memory_space<semaphore_mem>>
    tpu.enqueue_dma source(%20 : memref<1x128xf32, #tpu.memory_space<any>>) target(%21 : memref<1x128xf32, #tpu.memory_space<vmem>>) target_semaphore(%23 : memref<!tpu.dma_semaphore, #tpu.memory_space<semaphore_mem>>)
    %24 = arith.index_cast %arg0 : i32 to index
    %c3 = arith.constant 3 : index
    %25 = memref.load %arg1[%24, %c3] : memref<2x8xi32, #tpu.memory_space<smem>>
    %c0_i32_14 = arith.constant 0 : i32
    %c63_i32_15 = arith.constant 63 : i32
    %26 = arith.maxsi %c0_i32_14, %25 : i32
    %27 = arith.minsi %c63_i32_15, %26 : i32
    %c3_i32 = arith.constant 3 : i32
    %c0_i32_16 = arith.constant 0 : i32
    %28 = tpu.memref_slice %arg3[%27, %c0_i32_16] : memref<64x128xf32, #tpu.memory_space<any>> -> memref<1x128xf32, #tpu.memory_space<any>>
    %c3_i32_17 = arith.constant 3 : i32
    %c0_i32_18 = arith.constant 0 : i32
    %29 = tpu.memref_slice %arg9[%c3_i32_17, %c0_i32_18] : memref<8x128xf32, #tpu.memory_space<vmem>> -> memref<1x128xf32, #tpu.memory_space<vmem>>
    %30 = tpu.memref_slice %arg10[%c3_i32] : memref<8x!tpu.dma_semaphore, #tpu.memory_space<semaphore_mem>> -> memref<1x!tpu.dma_semaphore, #tpu.memory_space<semaphore_mem>>
    %31 = tpu.memref_squeeze %30 : memref<1x!tpu.dma_semaphore, #tpu.memory_space<semaphore_mem>> -> memref<!tpu.dma_semaphore, #tpu.memory_space<semaphore_mem>>
    tpu.enqueue_dma source(%28 : memref<1x128xf32, #tpu.memory_space<any>>) target(%29 : memref<1x128xf32, #tpu.memory_space<vmem>>) target_semaphore(%31 : memref<!tpu.dma_semaphore, #tpu.memory_space<semaphore_mem>>)
    %32 = arith.index_cast %arg0 : i32 to index
    %c4 = arith.constant 4 : index
    %33 = memref.load %arg1[%32, %c4] : memref<2x8xi32, #tpu.memory_space<smem>>
    %c0_i32_19 = arith.constant 0 : i32
    %c63_i32_20 = arith.constant 63 : i32
    %34 = arith.maxsi %c0_i32_19, %33 : i32
    %35 = arith.minsi %c63_i32_20, %34 : i32
    %c4_i32 = arith.constant 4 : i32
    %c0_i32_21 = arith.constant 0 : i32
    %36 = tpu.memref_slice %arg3[%35, %c0_i32_21] : memref<64x128xf32, #tpu.memory_space<any>> -> memref<1x128xf32, #tpu.memory_space<any>>
    %c4_i32_22 = arith.constant 4 : i32
    %c0_i32_23 = arith.constant 0 : i32
    %37 = tpu.memref_slice %arg9[%c4_i32_22, %c0_i32_23] : memref<8x128xf32, #tpu.memory_space<vmem>> -> memref<1x128xf32, #tpu.memory_space<vmem>>
    %38 = tpu.memref_slice %arg10[%c4_i32] : memref<8x!tpu.dma_semaphore, #tpu.memory_space<semaphore_mem>> -> memref<1x!tpu.dma_semaphore, #tpu.memory_space<semaphore_mem>>
    %39 = tpu.memref_squeeze %38 : memref<1x!tpu.dma_semaphore, #tpu.memory_space<semaphore_mem>> -> memref<!tpu.dma_semaphore, #tpu.memory_space<semaphore_mem>>
    tpu.enqueue_dma source(%36 : memref<1x128xf32, #tpu.memory_space<any>>) target(%37 : memref<1x128xf32, #tpu.memory_space<vmem>>) target_semaphore(%39 : memref<!tpu.dma_semaphore, #tpu.memory_space<semaphore_mem>>)
    %40 = arith.index_cast %arg0 : i32 to index
    %c5 = arith.constant 5 : index
    %41 = memref.load %arg1[%40, %c5] : memref<2x8xi32, #tpu.memory_space<smem>>
    %c0_i32_24 = arith.constant 0 : i32
    %c63_i32_25 = arith.constant 63 : i32
    %42 = arith.maxsi %c0_i32_24, %41 : i32
    %43 = arith.minsi %c63_i32_25, %42 : i32
    %c5_i32 = arith.constant 5 : i32
    %c0_i32_26 = arith.constant 0 : i32
    %44 = tpu.memref_slice %arg3[%43, %c0_i32_26] : memref<64x128xf32, #tpu.memory_space<any>> -> memref<1x128xf32, #tpu.memory_space<any>>
    %c5_i32_27 = arith.constant 5 : i32
    %c0_i32_28 = arith.constant 0 : i32
    %45 = tpu.memref_slice %arg9[%c5_i32_27, %c0_i32_28] : memref<8x128xf32, #tpu.memory_space<vmem>> -> memref<1x128xf32, #tpu.memory_space<vmem>>
    %46 = tpu.memref_slice %arg10[%c5_i32] : memref<8x!tpu.dma_semaphore, #tpu.memory_space<semaphore_mem>> -> memref<1x!tpu.dma_semaphore, #tpu.memory_space<semaphore_mem>>
    %47 = tpu.memref_squeeze %46 : memref<1x!tpu.dma_semaphore, #tpu.memory_space<semaphore_mem>> -> memref<!tpu.dma_semaphore, #tpu.memory_space<semaphore_mem>>
    tpu.enqueue_dma source(%44 : memref<1x128xf32, #tpu.memory_space<any>>) target(%45 : memref<1x128xf32, #tpu.memory_space<vmem>>) target_semaphore(%47 : memref<!tpu.dma_semaphore, #tpu.memory_space<semaphore_mem>>)
    %48 = arith.index_cast %arg0 : i32 to index
    %c6 = arith.constant 6 : index
    %49 = memref.load %arg1[%48, %c6] : memref<2x8xi32, #tpu.memory_space<smem>>
    %c0_i32_29 = arith.constant 0 : i32
    %c63_i32_30 = arith.constant 63 : i32
    %50 = arith.maxsi %c0_i32_29, %49 : i32
    %51 = arith.minsi %c63_i32_30, %50 : i32
    %c6_i32 = arith.constant 6 : i32
    %c0_i32_31 = arith.constant 0 : i32
    %52 = tpu.memref_slice %arg3[%51, %c0_i32_31] : memref<64x128xf32, #tpu.memory_space<any>> -> memref<1x128xf32, #tpu.memory_space<any>>
    %c6_i32_32 = arith.constant 6 : i32
    %c0_i32_33 = arith.constant 0 : i32
    %53 = tpu.memref_slice %arg9[%c6_i32_32, %c0_i32_33] : memref<8x128xf32, #tpu.memory_space<vmem>> -> memref<1x128xf32, #tpu.memory_space<vmem>>
    %54 = tpu.memref_slice %arg10[%c6_i32] : memref<8x!tpu.dma_semaphore, #tpu.memory_space<semaphore_mem>> -> memref<1x!tpu.dma_semaphore, #tpu.memory_space<semaphore_mem>>
    %55 = tpu.memref_squeeze %54 : memref<1x!tpu.dma_semaphore, #tpu.memory_space<semaphore_mem>> -> memref<!tpu.dma_semaphore, #tpu.memory_space<semaphore_mem>>
    tpu.enqueue_dma source(%52 : memref<1x128xf32, #tpu.memory_space<any>>) target(%53 : memref<1x128xf32, #tpu.memory_space<vmem>>) target_semaphore(%55 : memref<!tpu.dma_semaphore, #tpu.memory_space<semaphore_mem>>)
    %56 = arith.index_cast %arg0 : i32 to index
    %c7 = arith.constant 7 : index
    %57 = memref.load %arg1[%56, %c7] : memref<2x8xi32, #tpu.memory_space<smem>>
    %c0_i32_34 = arith.constant 0 : i32
    %c63_i32_35 = arith.constant 63 : i32
    %58 = arith.maxsi %c0_i32_34, %57 : i32
    %59 = arith.minsi %c63_i32_35, %58 : i32
    %c7_i32 = arith.constant 7 : i32
    %c0_i32_36 = arith.constant 0 : i32
    %60 = tpu.memref_slice %arg3[%59, %c0_i32_36] : memref<64x128xf32, #tpu.memory_space<any>> -> memref<1x128xf32, #tpu.memory_space<any>>
    %c7_i32_37 = arith.constant 7 : i32
    %c0_i32_38 = arith.constant 0 : i32
    %61 = tpu.memref_slice %arg9[%c7_i32_37, %c0_i32_38] : memref<8x128xf32, #tpu.memory_space<vmem>> -> memref<1x128xf32, #tpu.memory_space<vmem>>
    %62 = tpu.memref_slice %arg10[%c7_i32] : memref<8x!tpu.dma_semaphore, #tpu.memory_space<semaphore_mem>> -> memref<1x!tpu.dma_semaphore, #tpu.memory_space<semaphore_mem>>
    %63 = tpu.memref_squeeze %62 : memref<1x!tpu.dma_semaphore, #tpu.memory_space<semaphore_mem>> -> memref<!tpu.dma_semaphore, #tpu.memory_space<semaphore_mem>>
    tpu.enqueue_dma source(%60 : memref<1x128xf32, #tpu.memory_space<any>>) target(%61 : memref<1x128xf32, #tpu.memory_space<vmem>>) target_semaphore(%63 : memref<!tpu.dma_semaphore, #tpu.memory_space<semaphore_mem>>)
    %c0_39 = arith.constant 0 : index
    %c0_40 = arith.constant 0 : index
    %c0_41 = arith.constant 0 : index
    %64 = vector.load %arg2[%c0_39, %c0_40, %c0_41] : memref<1x8x1xi32, #tpu.memory_space<vmem>>, vector<1x8x1xi32>
    %65 = vector.shape_cast %64 : vector<1x8x1xi32> to vector<8x1xi32>
    %c0_42 = arith.constant 0 : index
    %c0_43 = arith.constant 0 : index
    %66 = vector.load %arg4[%c0_42, %c0_43] : memref<8x128xf32, #tpu.memory_space<vmem>>, vector<8x128xf32>
    %c0_i32_44 = arith.constant 0 : i32
    %67 = vector.broadcast %c0_i32_44 : i32 to vector<8x1xi32>
    %68 = arith.cmpi eq, %65, %67 : vector<8x1xi32>
    %69 = arith.extui %68 : vector<8x1xi1> to vector<8x1xi32>
    %70 = arith.sitofp %69 : vector<8x1xi32> to vector<8x1xf32>
    %71 = vector.extract_strided_slice %66 {offsets = [0, 0], sizes = [1, 128], strides = [1, 1]} : vector<8x128xf32> to vector<1x128xf32>
    %72 = vector.broadcast %70 : vector<8x1xf32> to vector<8x128xf32>
    %73 = vector.broadcast %71 : vector<1x128xf32> to vector<8x128xf32>
    %74 = arith.mulf %72, %73 : vector<8x128xf32>
    %c1_i32_45 = arith.constant 1 : i32
    %75 = vector.broadcast %c1_i32_45 : i32 to vector<8x1xi32>
    %76 = arith.cmpi eq, %65, %75 : vector<8x1xi32>
    %77 = arith.extui %76 : vector<8x1xi1> to vector<8x1xi32>
    %78 = arith.sitofp %77 : vector<8x1xi32> to vector<8x1xf32>
    %79 = vector.extract_strided_slice %66 {offsets = [1, 0], sizes = [1, 128], strides = [1, 1]} : vector<8x128xf32> to vector<1x128xf32>
    %80 = vector.broadcast %78 : vector<8x1xf32> to vector<8x128xf32>
    %81 = vector.broadcast %79 : vector<1x128xf32> to vector<8x128xf32>
    %82 = arith.mulf %80, %81 : vector<8x128xf32>
    %83 = arith.addf %74, %82 : vector<8x128xf32>
    %c2_i32_46 = arith.constant 2 : i32
    %84 = vector.broadcast %c2_i32_46 : i32 to vector<8x1xi32>
    %85 = arith.cmpi eq, %65, %84 : vector<8x1xi32>
    %86 = arith.extui %85 : vector<8x1xi1> to vector<8x1xi32>
    %87 = arith.sitofp %86 : vector<8x1xi32> to vector<8x1xf32>
    %88 = vector.extract_strided_slice %66 {offsets = [2, 0], sizes = [1, 128], strides = [1, 1]} : vector<8x128xf32> to vector<1x128xf32>
    %89 = vector.broadcast %87 : vector<8x1xf32> to vector<8x128xf32>
    %90 = vector.broadcast %88 : vector<1x128xf32> to vector<8x128xf32>
    %91 = arith.mulf %89, %90 : vector<8x128xf32>
    %92 = arith.addf %83, %91 : vector<8x128xf32>
    %c0_47 = arith.constant 0 : index
    %c0_48 = arith.constant 0 : index
    %93 = vector.load %arg5[%c0_47, %c0_48] : memref<8x128xf32, #tpu.memory_space<vmem>>, vector<8x128xf32>
    %94 = arith.addf %92, %93 : vector<8x128xf32>
    %c0_i32_49 = arith.constant 0 : i32
    %c0_i32_50 = arith.constant 0 : i32
    %95 = tpu.memref_slice %arg3[%3, %c0_i32_50] : memref<64x128xf32, #tpu.memory_space<any>> -> memref<1x128xf32, #tpu.memory_space<any>>
    %c0_i32_51 = arith.constant 0 : i32
    %c0_i32_52 = arith.constant 0 : i32
    %96 = tpu.memref_slice %arg9[%c0_i32_51, %c0_i32_52] : memref<8x128xf32, #tpu.memory_space<vmem>> -> memref<1x128xf32, #tpu.memory_space<vmem>>
    %97 = tpu.memref_slice %arg10[%c0_i32_49] : memref<8x!tpu.dma_semaphore, #tpu.memory_space<semaphore_mem>> -> memref<1x!tpu.dma_semaphore, #tpu.memory_space<semaphore_mem>>
    %98 = tpu.memref_squeeze %97 : memref<1x!tpu.dma_semaphore, #tpu.memory_space<semaphore_mem>> -> memref<!tpu.dma_semaphore, #tpu.memory_space<semaphore_mem>>
    tpu.wait_dma2 semaphore(%98 : memref<!tpu.dma_semaphore, #tpu.memory_space<semaphore_mem>>) src(%95 : memref<1x128xf32, #tpu.memory_space<any>>) dst(%96 : memref<1x128xf32, #tpu.memory_space<vmem>>)
    %c1_i32_53 = arith.constant 1 : i32
    %c0_i32_54 = arith.constant 0 : i32
    %99 = tpu.memref_slice %arg3[%11, %c0_i32_54] : memref<64x128xf32, #tpu.memory_space<any>> -> memref<1x128xf32, #tpu.memory_space<any>>
    %c1_i32_55 = arith.constant 1 : i32
    %c0_i32_56 = arith.constant 0 : i32
    %100 = tpu.memref_slice %arg9[%c1_i32_55, %c0_i32_56] : memref<8x128xf32, #tpu.memory_space<vmem>> -> memref<1x128xf32, #tpu.memory_space<vmem>>
    %101 = tpu.memref_slice %arg10[%c1_i32_53] : memref<8x!tpu.dma_semaphore, #tpu.memory_space<semaphore_mem>> -> memref<1x!tpu.dma_semaphore, #tpu.memory_space<semaphore_mem>>
    %102 = tpu.memref_squeeze %101 : memref<1x!tpu.dma_semaphore, #tpu.memory_space<semaphore_mem>> -> memref<!tpu.dma_semaphore, #tpu.memory_space<semaphore_mem>>
    tpu.wait_dma2 semaphore(%102 : memref<!tpu.dma_semaphore, #tpu.memory_space<semaphore_mem>>) src(%99 : memref<1x128xf32, #tpu.memory_space<any>>) dst(%100 : memref<1x128xf32, #tpu.memory_space<vmem>>)
    %c2_i32_57 = arith.constant 2 : i32
    %c0_i32_58 = arith.constant 0 : i32
    %103 = tpu.memref_slice %arg3[%19, %c0_i32_58] : memref<64x128xf32, #tpu.memory_space<any>> -> memref<1x128xf32, #tpu.memory_space<any>>
    %c2_i32_59 = arith.constant 2 : i32
    %c0_i32_60 = arith.constant 0 : i32
    %104 = tpu.memref_slice %arg9[%c2_i32_59, %c0_i32_60] : memref<8x128xf32, #tpu.memory_space<vmem>> -> memref<1x128xf32, #tpu.memory_space<vmem>>
    %105 = tpu.memref_slice %arg10[%c2_i32_57] : memref<8x!tpu.dma_semaphore, #tpu.memory_space<semaphore_mem>> -> memref<1x!tpu.dma_semaphore, #tpu.memory_space<semaphore_mem>>
    %106 = tpu.memref_squeeze %105 : memref<1x!tpu.dma_semaphore, #tpu.memory_space<semaphore_mem>> -> memref<!tpu.dma_semaphore, #tpu.memory_space<semaphore_mem>>
    tpu.wait_dma2 semaphore(%106 : memref<!tpu.dma_semaphore, #tpu.memory_space<semaphore_mem>>) src(%103 : memref<1x128xf32, #tpu.memory_space<any>>) dst(%104 : memref<1x128xf32, #tpu.memory_space<vmem>>)
    %c3_i32_61 = arith.constant 3 : i32
    %c0_i32_62 = arith.constant 0 : i32
    %107 = tpu.memref_slice %arg3[%27, %c0_i32_62] : memref<64x128xf32, #tpu.memory_space<any>> -> memref<1x128xf32, #tpu.memory_space<any>>
    %c3_i32_63 = arith.constant 3 : i32
    %c0_i32_64 = arith.constant 0 : i32
    %108 = tpu.memref_slice %arg9[%c3_i32_63, %c0_i32_64] : memref<8x128xf32, #tpu.memory_space<vmem>> -> memref<1x128xf32, #tpu.memory_space<vmem>>
    %109 = tpu.memref_slice %arg10[%c3_i32_61] : memref<8x!tpu.dma_semaphore, #tpu.memory_space<semaphore_mem>> -> memref<1x!tpu.dma_semaphore, #tpu.memory_space<semaphore_mem>>
    %110 = tpu.memref_squeeze %109 : memref<1x!tpu.dma_semaphore, #tpu.memory_space<semaphore_mem>> -> memref<!tpu.dma_semaphore, #tpu.memory_space<semaphore_mem>>
    tpu.wait_dma2 semaphore(%110 : memref<!tpu.dma_semaphore, #tpu.memory_space<semaphore_mem>>) src(%107 : memref<1x128xf32, #tpu.memory_space<any>>) dst(%108 : memref<1x128xf32, #tpu.memory_space<vmem>>)
    %c4_i32_65 = arith.constant 4 : i32
    %c0_i32_66 = arith.constant 0 : i32
    %111 = tpu.memref_slice %arg3[%35, %c0_i32_66] : memref<64x128xf32, #tpu.memory_space<any>> -> memref<1x128xf32, #tpu.memory_space<any>>
    %c4_i32_67 = arith.constant 4 : i32
    %c0_i32_68 = arith.constant 0 : i32
    %112 = tpu.memref_slice %arg9[%c4_i32_67, %c0_i32_68] : memref<8x128xf32, #tpu.memory_space<vmem>> -> memref<1x128xf32, #tpu.memory_space<vmem>>
    %113 = tpu.memref_slice %arg10[%c4_i32_65] : memref<8x!tpu.dma_semaphore, #tpu.memory_space<semaphore_mem>> -> memref<1x!tpu.dma_semaphore, #tpu.memory_space<semaphore_mem>>
    %114 = tpu.memref_squeeze %113 : memref<1x!tpu.dma_semaphore, #tpu.memory_space<semaphore_mem>> -> memref<!tpu.dma_semaphore, #tpu.memory_space<semaphore_mem>>
    tpu.wait_dma2 semaphore(%114 : memref<!tpu.dma_semaphore, #tpu.memory_space<semaphore_mem>>) src(%111 : memref<1x128xf32, #tpu.memory_space<any>>) dst(%112 : memref<1x128xf32, #tpu.memory_space<vmem>>)
    %c5_i32_69 = arith.constant 5 : i32
    %c0_i32_70 = arith.constant 0 : i32
    %115 = tpu.memref_slice %arg3[%43, %c0_i32_70] : memref<64x128xf32, #tpu.memory_space<any>> -> memref<1x128xf32, #tpu.memory_space<any>>
    %c5_i32_71 = arith.constant 5 : i32
    %c0_i32_72 = arith.constant 0 : i32
    %116 = tpu.memref_slice %arg9[%c5_i32_71, %c0_i32_72] : memref<8x128xf32, #tpu.memory_space<vmem>> -> memref<1x128xf32, #tpu.memory_space<vmem>>
    %117 = tpu.memref_slice %arg10[%c5_i32_69] : memref<8x!tpu.dma_semaphore, #tpu.memory_space<semaphore_mem>> -> memref<1x!tpu.dma_semaphore, #tpu.memory_space<semaphore_mem>>
    %118 = tpu.memref_squeeze %117 : memref<1x!tpu.dma_semaphore, #tpu.memory_space<semaphore_mem>> -> memref<!tpu.dma_semaphore, #tpu.memory_space<semaphore_mem>>
    tpu.wait_dma2 semaphore(%118 : memref<!tpu.dma_semaphore, #tpu.memory_space<semaphore_mem>>) src(%115 : memref<1x128xf32, #tpu.memory_space<any>>) dst(%116 : memref<1x128xf32, #tpu.memory_space<vmem>>)
    %c6_i32_73 = arith.constant 6 : i32
    %c0_i32_74 = arith.constant 0 : i32
    %119 = tpu.memref_slice %arg3[%51, %c0_i32_74] : memref<64x128xf32, #tpu.memory_space<any>> -> memref<1x128xf32, #tpu.memory_space<any>>
    %c6_i32_75 = arith.constant 6 : i32
    %c0_i32_76 = arith.constant 0 : i32
    %120 = tpu.memref_slice %arg9[%c6_i32_75, %c0_i32_76] : memref<8x128xf32, #tpu.memory_space<vmem>> -> memref<1x128xf32, #tpu.memory_space<vmem>>
    %121 = tpu.memref_slice %arg10[%c6_i32_73] : memref<8x!tpu.dma_semaphore, #tpu.memory_space<semaphore_mem>> -> memref<1x!tpu.dma_semaphore, #tpu.memory_space<semaphore_mem>>
    %122 = tpu.memref_squeeze %121 : memref<1x!tpu.dma_semaphore, #tpu.memory_space<semaphore_mem>> -> memref<!tpu.dma_semaphore, #tpu.memory_space<semaphore_mem>>
    tpu.wait_dma2 semaphore(%122 : memref<!tpu.dma_semaphore, #tpu.memory_space<semaphore_mem>>) src(%119 : memref<1x128xf32, #tpu.memory_space<any>>) dst(%120 : memref<1x128xf32, #tpu.memory_space<vmem>>)
    %c7_i32_77 = arith.constant 7 : i32
    %c0_i32_78 = arith.constant 0 : i32
    %123 = tpu.memref_slice %arg3[%59, %c0_i32_78] : memref<64x128xf32, #tpu.memory_space<any>> -> memref<1x128xf32, #tpu.memory_space<any>>
    %c7_i32_79 = arith.constant 7 : i32
    %c0_i32_80 = arith.constant 0 : i32
    %124 = tpu.memref_slice %arg9[%c7_i32_79, %c0_i32_80] : memref<8x128xf32, #tpu.memory_space<vmem>> -> memref<1x128xf32, #tpu.memory_space<vmem>>
    %125 = tpu.memref_slice %arg10[%c7_i32_77] : memref<8x!tpu.dma_semaphore, #tpu.memory_space<semaphore_mem>> -> memref<1x!tpu.dma_semaphore, #tpu.memory_space<semaphore_mem>>
    %126 = tpu.memref_squeeze %125 : memref<1x!tpu.dma_semaphore, #tpu.memory_space<semaphore_mem>> -> memref<!tpu.dma_semaphore, #tpu.memory_space<semaphore_mem>>
    tpu.wait_dma2 semaphore(%126 : memref<!tpu.dma_semaphore, #tpu.memory_space<semaphore_mem>>) src(%123 : memref<1x128xf32, #tpu.memory_space<any>>) dst(%124 : memref<1x128xf32, #tpu.memory_space<vmem>>)
    %c0_81 = arith.constant 0 : index
    %c0_82 = arith.constant 0 : index
    %127 = vector.load %arg9[%c0_81, %c0_82] : memref<8x128xf32, #tpu.memory_space<vmem>>, vector<8x128xf32>
    %128 = arith.addf %127, %94 : vector<8x128xf32>
    %cst = arith.constant dense<0.000000e+00> : vector<8xf32>
    %129 = vector.multi_reduction <add>, %128, %cst [1] : vector<8x128xf32> to vector<8xf32>
    %130 = vector.shape_cast %129 : vector<8xf32> to vector<8x1xf32>
    %cst_83 = arith.constant 1.280000e+02 : f32
    %131 = vector.broadcast %cst_83 : f32 to vector<8x1xf32>
    %132 = arith.divf %130, %131 : vector<8x1xf32>
    %133 = vector.broadcast %132 : vector<8x1xf32> to vector<8x128xf32>
    %134 = arith.subf %128, %133 : vector<8x128xf32>
    %135 = arith.mulf %134, %134 : vector<8x128xf32>
    %cst_84 = arith.constant dense<0.000000e+00> : vector<8xf32>
    %136 = vector.multi_reduction <add>, %135, %cst_84 [1] : vector<8x128xf32> to vector<8xf32>
    %137 = vector.shape_cast %136 : vector<8xf32> to vector<8x1xf32>
    %cst_85 = arith.constant 0.00787401571 : f32
    %138 = vector.broadcast %cst_85 : f32 to vector<8x1xf32>
    %139 = arith.mulf %137, %138 : vector<8x1xf32>
    %140 = math.sqrt %139 : vector<8x1xf32>
    %cst_86 = arith.constant 9.99999997E-7 : f32
    %141 = vector.broadcast %cst_86 : f32 to vector<8x1xf32>
    %142 = arith.addf %140, %141 : vector<8x1xf32>
    %143 = tpu.reciprocal %142 : vector<8x1xf32> -> vector<8x1xf32>
    %c0_87 = arith.constant 0 : index
    %c0_88 = arith.constant 0 : index
    %144 = vector.load %arg6[%c0_87, %c0_88] : memref<1x128xf32, #tpu.memory_space<vmem>>, vector<1x128xf32>
    %145 = vector.broadcast %143 : vector<8x1xf32> to vector<8x128xf32>
    %146 = arith.mulf %134, %145 : vector<8x128xf32>
    %147 = vector.broadcast %144 : vector<1x128xf32> to vector<8x128xf32>
    %148 = arith.mulf %147, %146 : vector<8x128xf32>
    %c0_89 = arith.constant 0 : index
    %c0_90 = arith.constant 0 : index
    %149 = vector.load %arg7[%c0_89, %c0_90] : memref<1x128xf32, #tpu.memory_space<vmem>>, vector<1x128xf32>
    %150 = vector.broadcast %149 : vector<1x128xf32> to vector<8x128xf32>
    %151 = arith.addf %148, %150 : vector<8x128xf32>
    %c0_91 = arith.constant 0 : index
    %c0_92 = arith.constant 0 : index
    %c0_93 = arith.constant 0 : index
    %152 = vector.load %arg8[%c0_91, %c0_92, %c0_93] : memref<1x8x128xf32, #tpu.memory_space<vmem>>, vector<1x8x128xf32>
    %153 = vector.shape_cast %152 : vector<1x8x128xf32> to vector<8x128xf32>
    %154 = vector.shape_cast %151 : vector<8x128xf32> to vector<1x8x128xf32>
    tpu.vector_store %arg8[%c0_91, %c0_92, %c0_93], %154 {strides = array<i32>} : memref<1x8x128xf32, #tpu.memory_space<vmem>>, vector<1x8x128xf32>,
    return
  }
  func.func @transform_0(%arg0: i32, %arg1: memref<2x8xi32, #tpu.memory_space<smem>>) -> (i32, i32, i32) {
    %c0_i32 = arith.constant 0 : i32
    %c0_i32_0 = arith.constant 0 : i32
    %c0_i32_1 = arith.constant 0 : i32
    return %arg0, %c0_i32, %c0_i32_0 : i32, i32, i32
  }
  func.func @transform_2(%arg0: i32, %arg1: memref<2x8xi32, #tpu.memory_space<smem>>) -> (i32, i32) {
    %c0_i32 = arith.constant 0 : i32
    %c0_i32_0 = arith.constant 0 : i32
    %c0_i32_1 = arith.constant 0 : i32
    return %c0_i32, %c0_i32_0 : i32, i32
  }
  func.func @transform_3(%arg0: i32, %arg1: memref<2x8xi32, #tpu.memory_space<smem>>) -> (i32, i32) {
    %c0_i32 = arith.constant 0 : i32
    %c0_i32_0 = arith.constant 0 : i32
    %c0_i32_1 = arith.constant 0 : i32
    return %c0_i32, %c0_i32_0 : i32, i32
  }
  func.func @transform_4(%arg0: i32, %arg1: memref<2x8xi32, #tpu.memory_space<smem>>) -> (i32, i32) {
    %c0_i32 = arith.constant 0 : i32
    %c0_i32_0 = arith.constant 0 : i32
    %c0_i32_1 = arith.constant 0 : i32
    return %c0_i32, %c0_i32_0 : i32, i32
  }
  func.func @transform_5(%arg0: i32, %arg1: memref<2x8xi32, #tpu.memory_space<smem>>) -> (i32, i32) {
    %c0_i32 = arith.constant 0 : i32
    %c0_i32_0 = arith.constant 0 : i32
    %c0_i32_1 = arith.constant 0 : i32
    return %c0_i32, %c0_i32_0 : i32, i32
  }
  func.func @transform_6(%arg0: i32, %arg1: memref<2x8xi32, #tpu.memory_space<smem>>) -> (i32, i32, i32) {
    %c0_i32 = arith.constant 0 : i32
    %c0_i32_0 = arith.constant 0 : i32
    %c0_i32_1 = arith.constant 0 : i32
    return %arg0, %c0_i32, %c0_i32_0 : i32, i32, i32
  }
}

</mosaic_0001>

<llo_original>
// kernel: tpu_custom_call.1
$region0: #{tpu_custom_call.1}
  #allocation0 [shape = 'u32[]', space=smem, size = 0x4, offset = 0x4, fixed_abs, tag = 'smem constant byte address 0x4 - core index']
  #allocation1 [shape = 'u32[144,128]{1,0:T(1,128)}', space=vmem, size = 0x12000, scoped, tag = 'internal scratch']
  #allocation2 [shape = 'f32[8,128]{1,0:T(8,128)}', space=vmem, size = 0x1000, scoped, tag = 'scratch operand']
  #allocation3 [shape = 's32[8]{0}', space=sflag, size = 0x20, scoped, tag = 'scratch operand']
  #allocation4 [shape = 's32[1]{0}', space=sflag, size = 0x4, scoped, tag = 'scoped memory for tpu_custom_call.1']
  #allocation5 [shape = 'u8[1024]{0}', space=smem, size = 0x400, scoped, tag = 'prefetched SMEM operand 0']
  #allocation8 [shape = 's32[]', space=sflag, size = 0x4, offset = 0, fixed_abs, tag = 'sflag constant byte address 0x0 - dummy sync flag']
  #allocation9 [shape = 's32[]', space=sflag, size = 0x4, offset = 0, fixed_abs, tag = 'sflag constant byte address 0x0 - dummy sync flag']
  #allocation10 [shape = 'u32[]', space=smem, size = 0x4, offset = 0x44, fixed_abs, tag = 'smem constant byte address 0x44 - assertion arg 0']
  #allocation11 [shape = 'u32[]', space=smem, size = 0x4, offset = 0x48, fixed_abs, tag = 'smem constant byte address 0x48 - assertion arg 1']
  #allocation12 [shape = 's32[]', space=sflag, size = 0x4, offset = 0, fixed_abs, tag = 'sflag constant byte address 0x0 - dummy sync flag']
  #allocation13 [shape = 's32[]', space=sflag, size = 0x4, offset = 0, fixed_abs, tag = 'sflag constant byte address 0x0 - dummy sync flag']
  #allocation14 [shape = 's32[]', space=sflag, size = 0x4, offset = 0, fixed_abs, tag = 'sflag constant byte address 0x0 - dummy sync flag']
  #allocation15 [shape = 's32[]', space=sflag, size = 0x4, offset = 0, fixed_abs, tag = 'sflag constant byte address 0x0 - dummy sync flag']
  #allocation16 [shape = 's32[]', space=sflag, size = 0x4, offset = 0, fixed_abs, tag = 'sflag constant byte address 0x0 - dummy sync flag']
  #allocation17 [shape = 's32[]', space=sflag, size = 0x4, offset = 0, fixed_abs, tag = 'sflag constant byte address 0x0 - dummy sync flag']
  #allocation18 [shape = 's32[]', space=sflag, size = 0x4, offset = 0, fixed_abs, tag = 'sflag constant byte address 0x0 - dummy sync flag']
  #allocation19 [shape = 's32[]', space=sflag, size = 0x4, offset = 0, fixed_abs, tag = 'sflag constant byte address 0x0 - dummy sync flag']
  #allocation20 [shape = 's32[]', space=sflag, size = 0x4, offset = 0, fixed_abs, tag = 'sflag constant byte address 0x0 - dummy sync flag']
  #allocation21 [shape = 's32[]', space=sflag, size = 0x4, offset = 0, fixed_abs, tag = 'sflag constant byte address 0x0 - dummy sync flag']
  #allocation22 [shape = 's32[]', space=sflag, size = 0x4, offset = 0, fixed_abs, tag = 'sflag constant byte address 0x0 - dummy sync flag']
  #allocation23 [shape = 's32[]', space=sflag, size = 0x4, offset = 0, fixed_abs, tag = 'sflag constant byte address 0x0 - dummy sync flag']
  #allocation24 [shape = 's32[]', space=sflag, size = 0x4, offset = 0, fixed_abs, tag = 'sflag constant byte address 0x0 - dummy sync flag']
  #allocation25 [shape = 's32[]', space=sflag, size = 0x4, offset = 0, fixed_abs, tag = 'sflag constant byte address 0x0 - dummy sync flag']
  %s0 = inlined_call_operand.vmem [shape: s32[2,8], index: 0, kind: input, shape index: {}]
  %s1 = inlined_call_operand.vmem [shape: s32[2,8,1], index: 1, kind: input, shape index: {}]
  %s2 = inlined_call_operand.hbm [shape: f32[64,128], index: 2, kind: input, shape index: {}]
  %s3 = inlined_call_operand.vmem [shape: f32[8,128], index: 3, kind: input, shape index: {}]
  %s4 = inlined_call_operand.vmem [shape: f32[8,128], index: 4, kind: input, shape index: {}]
  %s5 = inlined_call_operand.vmem [shape: f32[1,128], index: 5, kind: input, shape index: {}]
  %s6 = inlined_call_operand.vmem [shape: f32[1,128], index: 6, kind: input, shape index: {}]
  %s7 = inlined_call_operand.hbm [shape: f32[2,8,128], index: 7, kind: output, shape index: {}]
  %s8 = sld [smem:[#allocation0]]
  $region85: #{tpu_custom_call.1} parent=0
    _
  %s10 = ssub.s32 1, %s8
  %s11 = scalar_select 0, %s10, %s8
  %s12 = sshll.u32 %s0, 4
  %s13 = int_to_ptr.vmem [resolvable:$true] %s12
  %15 = dma.vmem_to_smem %s13, 32, [#allocation5], [#allocation4]
  %16 = dma.done [#allocation4], 32
  %17 = sfence
  $region1: #{tpu_custom_call.1} parent=0
    #allocation6 [shape = 'u8[8192]{0}', space=vmem, size = 0x2000, scoped, tag = 'output window, operand 0']
    #allocation7 [shape = 's32[2]{0}', space=sflag, size = 0x8, scoped, tag = 'scoped memory for tpu_custom_call.1']
    %18 = vsyncpa [#allocation7], 0
    %s19 = scalar_lea.sflag [#allocation7], 1
    %20 = vsyncpa %s19, 0
    loop: start=0, step=1, limit=4
    $region2: #{tpu_custom_call.1} parent=1 // loop_pre_header
      _
    $region3: #{tpu_custom_call.1} parent=1 // loop_header
      %s22 = sphi 0, %s26
      %p23 = scmp.ge.s32.totalorder %s22, 4
      %s32 = sphi 0, %s34
      %s35 = sphi 0, %s32
      %s36 = sphi 0, %s35
      %s52 = sphi 0, %s36
      %s56 = sphi 0, %s56
      %s58 = sphi 0, %s56
      %s59 = sphi 0, %s58
      %s73 = sphi 0, %s59
      %s77 = sphi 0, %s77
      %s79 = sphi 0, %s77
      %s80 = sphi 0, %s79
      %s94 = sphi 0, %s80
      %s98 = sphi 0, %s98
      %s100 = sphi 0, %s98
      %s101 = sphi 0, %s100
      %s115 = sphi 0, %s101
      %s119 = sphi 0, %s119
      %s121 = sphi 0, %s119
      %s122 = sphi 0, %s121
      %s136 = sphi 0, %s122
      %s142 = sphi 0, %s144
      %s145 = sphi 0, %s142
      %s146 = sphi 0, %s145
      %s162 = sphi 0, %s146
    $region4: #{tpu_custom_call.1} parent=1 // loop_header_branch
      %25 = sbr.rel (%p23) target = $region8
    $region5: #{tpu_custom_call.1} parent=1 // loop_body
      %s27 = ssub.s32 %s22, 1
      %s28 = ssub.s32 %s22, 2
      %s29 = sadd.s32 %s22, 1
      %s30 = ssub.s32 %s22, %s29
      %p31 = scmp.eq.s32.totalorder %s30, 0
      %s33 = sadd.s32 %s32, 1
      %s34 = scalar_select %p31, %s32, %s33
      %p37 = pneg %p31
      %p38 = scmp.eq.s32.totalorder %s22, 1
      %p39 = por %p37, %p38
      %p40 = scmp.ne.s32.totalorder %s32, %s35
      %p41 = scmp.eq.s32.totalorder %s22, 0
      %p42 = por %p40, %p41
      %p43 = scmp.ne.s32.totalorder %s32, %s35
      %p44 = scmp.eq.s32.totalorder %s27, 1
      %p45 = por %p43, %p44
      %p46 = scmp.ne.s32.totalorder %s35, %s36
      %p47 = scmp.eq.s32.totalorder %s27, 0
      %p48 = por %p46, %p47
      %p49 = scmp.ne.s32.totalorder %s35, %s36
      %p50 = scmp.eq.s32.totalorder %s28, 1
      %p51 = por %p49, %p50
      %p53 = scmp.ne.s32.totalorder %s36, %s52
      %p54 = scmp.eq.s32.totalorder %s28, 0
      %p55 = por %p53, %p54
      %s57 = sadd.s32 %s56, 1
      %p60 = scmp.eq.s32.totalorder %s22, 1
      %p61 = scmp.ne.s32.totalorder %s56, %s58
      %p62 = scmp.eq.s32.totalorder %s22, 0
      %p63 = por %p61, %p62
      %p64 = scmp.ne.s32.totalorder %s56, %s58
      %p65 = scmp.eq.s32.totalorder %s27, 1
      %p66 = por %p64, %p65
      %p67 = scmp.ne.s32.totalorder %s58, %s59
      %p68 = scmp.eq.s32.totalorder %s27, 0
      %p69 = por %p67, %p68
      %p70 = scmp.ne.s32.totalorder %s58, %s59
      %p71 = scmp.eq.s32.totalorder %s28, 1
      %p72 = por %p70, %p71
      %p74 = scmp.ne.s32.totalorder %s59, %s73
      %p75 = scmp.eq.s32.totalorder %s28, 0
      %p76 = por %p74, %p75
      %s78 = sadd.s32 %s77, 1
      %p81 = scmp.eq.s32.totalorder %s22, 1
      %p82 = scmp.ne.s32.totalorder %s77, %s79
      %p83 = scmp.eq.s32.totalorder %s22, 0
      %p84 = por %p82, %p83
      %p85 = scmp.ne.s32.totalorder %s77, %s79
      %p86 = scmp.eq.s32.totalorder %s27, 1
      %p87 = por %p85, %p86
      %p88 = scmp.ne.s32.totalorder %s79, %s80
      %p89 = scmp.eq.s32.totalorder %s27, 0
      %p90 = por %p88, %p89
      %p91 = scmp.ne.s32.totalorder %s79, %s80
      %p92 = scmp.eq.s32.totalorder %s28, 1
      %p93 = por %p91, %p92
      %p95 = scmp.ne.s32.totalorder %s80, %s94
      %p96 = scmp.eq.s32.totalorder %s28, 0
      %p97 = por %p95, %p96
      %s99 = sadd.s32 %s98, 1
      %p102 = scmp.eq.s32.totalorder %s22, 1
      %p103 = scmp.ne.s32.totalorder %s98, %s100
      %p104 = scmp.eq.s32.totalorder %s22, 0
      %p105 = por %p103, %p104
      %p106 = scmp.ne.s32.totalorder %s98, %s100
      %p107 = scmp.eq.s32.totalorder %s27, 1
      %p108 = por %p106, %p107
      %p109 = scmp.ne.s32.totalorder %s100, %s101
      %p110 = scmp.eq.s32.totalorder %s27, 0
      %p111 = por %p109, %p110
      %p112 = scmp.ne.s32.totalorder %s100, %s101
      %p113 = scmp.eq.s32.totalorder %s28, 1
      %p114 = por %p112, %p113
      %p116 = scmp.ne.s32.totalorder %s101, %s115
      %p117 = scmp.eq.s32.totalorder %s28, 0
      %p118 = por %p116, %p117
      %s120 = sadd.s32 %s119, 1
      %p123 = scmp.eq.s32.totalorder %s22, 1
      %p124 = scmp.ne.s32.totalorder %s119, %s121
      %p125 = scmp.eq.s32.totalorder %s22, 0
      %p126 = por %p124, %p125
      %p127 = scmp.ne.s32.totalorder %s119, %s121
      %p128 = scmp.eq.s32.totalorder %s27, 1
      %p129 = por %p127, %p128
      %p130 = scmp.ne.s32.totalorder %s121, %s122
      %p131 = scmp.eq.s32.totalorder %s27, 0
      %p132 = por %p130, %p131
      %p133 = scmp.ne.s32.totalorder %s121, %s122
      %p134 = scmp.eq.s32.totalorder %s28, 1
      %p135 = por %p133, %p134
      %p137 = scmp.ne.s32.totalorder %s122, %s136
      %p138 = scmp.eq.s32.totalorder %s28, 0
      %p139 = por %p137, %p138
      %s140 = ssub.s32 %s22, %s29
      %p141 = scmp.eq.s32.totalorder %s140, 0
      %s143 = sadd.s32 %s142, 1
      %s144 = scalar_select %p141, %s142, %s143
      %p147 = pneg %p141
      %p148 = scmp.eq.s32.totalorder %s22, 1
      %p149 = por %p147, %p148
      %p150 = scmp.ne.s32.totalorder %s142, %s145
      %p151 = scmp.eq.s32.totalorder %s22, 0
      %p152 = por %p150, %p151
      %p153 = scmp.ne.s32.totalorder %s142, %s145
      %p154 = scmp.eq.s32.totalorder %s27, 1
      %p155 = por %p153, %p154
      %p156 = scmp.ne.s32.totalorder %s145, %s146
      %p157 = scmp.eq.s32.totalorder %s27, 0
      %p158 = por %p156, %p157
      %p159 = scmp.ne.s32.totalorder %s145, %s146
      %p160 = scmp.eq.s32.totalorder %s28, 1
      %p161 = por %p159, %p160
      %p163 = scmp.ne.s32.totalorder %s146, %s162
      %p164 = scmp.eq.s32.totalorder %s28, 0
      %p165 = por %p163, %p164
      %p166 = scmp.le.s32.totalorder 1, %s22
      %p167 = scmp.lt.s32.totalorder %s22, 3
      %p168 = pnand %p166, %p167
      %p169 = pneg %p168
      // Predicated region
      $region9: #{tpu_custom_call.1} parent=5 // pred_check
        _
      $region10: #{tpu_custom_call.1} parent=5 // pred_check_branch
        %171 = sbr.rel (%p168) target = $region12
      $region11: #{tpu_custom_call.1} parent=5 // pred_region
        %s172 = ssub.s32 %s22, 1
        // Predicated region
        $region13: #{tpu_custom_call.1} parent=11 // pred_check
          %p173 = pneg %p69
        $region14: #{tpu_custom_call.1} parent=11 // pred_check_branch
          %175 = sbr.rel (%p173) target = $region16
        $region15: #{tpu_custom_call.1} parent=11 // pred_region
          _
        $region16: #{tpu_custom_call.1} parent=11 // pred_fallthru
          _
        // Predicated region
        $region17: #{tpu_custom_call.1} parent=11 // pred_check
          %p176 = pneg %p90
        $region18: #{tpu_custom_call.1} parent=11 // pred_check_branch
          %178 = sbr.rel (%p176) target = $region20
        $region19: #{tpu_custom_call.1} parent=11 // pred_region
          _
        $region20: #{tpu_custom_call.1} parent=11 // pred_fallthru
          _
        // Predicated region
        $region21: #{tpu_custom_call.1} parent=11 // pred_check
          %p179 = pneg %p111
        $region22: #{tpu_custom_call.1} parent=11 // pred_check_branch
          %181 = sbr.rel (%p179) target = $region24
        $region23: #{tpu_custom_call.1} parent=11 // pred_region
          _
        $region24: #{tpu_custom_call.1} parent=11 // pred_fallthru
          _
        // Predicated region
        $region25: #{tpu_custom_call.1} parent=11 // pred_check
          %p182 = pneg %p132
        $region26: #{tpu_custom_call.1} parent=11 // pred_check_branch
          %184 = sbr.rel (%p182) target = $region28
        $region27: #{tpu_custom_call.1} parent=11 // pred_region
          _
        $region28: #{tpu_custom_call.1} parent=11 // pred_fallthru
          _
      $region12: #{tpu_custom_call.1} parent=5 // pred_fallthru
        _
      %p185 = scmp.lt.s32.totalorder %s22, 2
      // Predicated region
      $region29: #{tpu_custom_call.1} parent=5 // pred_check
        %p186 = pneg %p185
      $region30: #{tpu_custom_call.1} parent=5 // pred_check_branch
        %188 = sbr.rel (%p186) target = $region32
      $region31: #{tpu_custom_call.1} parent=5 // pred_region
        // Predicated region
        $region33: #{tpu_custom_call.1} parent=31 // pred_check
          %p189 = pneg %p42
        $region34: #{tpu_custom_call.1} parent=31 // pred_check_branch
          %191 = sbr.rel (%p189) target = $region36
        $region35: #{tpu_custom_call.1} parent=31 // pred_region
          %p192 = scmp.lt.s32.totalorder %s22, 1
          %s193 = scalar_select %p192, %s22, 1
          %s194 = smul.addr %s193, 8
          %s195 = scalar_lea.vmem %s1, %s194
        $region36: #{tpu_custom_call.1} parent=31 // pred_fallthru
          _
      $region32: #{tpu_custom_call.1} parent=5 // pred_fallthru
        _
      %p196 = scmp.le.s32.totalorder 1, %s22
      %p197 = scmp.lt.s32.totalorder %s22, 3
      %p198 = pnand %p196, %p197
      %p199 = pneg %p198
      // Predicated region
      $region37: #{tpu_custom_call.1} parent=5 // pred_check
        _
      $region38: #{tpu_custom_call.1} parent=5 // pred_check_branch
        %201 = sbr.rel (%p198) target = $region40
      $region39: #{tpu_custom_call.1} parent=5 // pred_region
        %s202 = ssub.s32 %s22, 1
        %p203 = scmp.lt.s32.totalorder %s27, 1
        %s204 = scalar_select %p203, %s27, 1
        %s205 = smul.addr %s204, 8
        %s206 = scalar_lea.vmem %s1, %s205
        %p207 = pneg %p48
        %p208 = pneg %p45
        %p209 = pneg %p69
        %p210 = pneg %p66
        %p211 = pneg %p90
        %p212 = pneg %p87
        %p213 = pneg %p111
        %p214 = pneg %p108
        %p215 = pneg %p132
        %p216 = pneg %p129
        %p217 = pneg %p158
        %p218 = pneg %p155
        %s219 = sand.u32 %s145, 1
        %s220 = scalar_lea.sflag [#allocation7], %s219
        %s221 = sand.u32 %s145, 1
        %s222 = smul.addr %s221, 8
        %s223 = scalar_lea.vmem [#allocation6], %s222
        %p224 = scmp.lt.s32.totalorder %s27, 1
        %s225 = scalar_select %p224, %s27, 1
        %s226 = smul.addr %s225, 8
        %s227 = scalar_lea.vmem %s1, %s226
        %s228 = smul.u32 %s27, 128
        %s229 = sld [smem:[#allocation5 + %s228]]
        %p230 = scmp.gt.s32.totalorder %s229, 0
        %s231 = scalar_select %p230, %s229, 0
        %p232 = scmp.lt.s32.totalorder %s231, 63
        %s233 = scalar_select %p232, %s231, 63
        %s234 = smul.addr %s233, 16
        %s235 = scalar_lea.hbm %s2, %s234
        // Predicated region
        $region41: #{tpu_custom_call.1} parent=39 // pred_check
          _
        $region42: #{tpu_custom_call.1} parent=39 // pred_check_branch
          %237 = sbr.rel target = $region44
        $region43: #{tpu_custom_call.1} parent=39 // pred_region
          %238 = sst [smem:[#allocation10]] [#allocation9]
          %239 = sst [smem:[#allocation11]] [#allocation8]
        $region44: #{tpu_custom_call.1} parent=39 // pred_fallthru
          _
        %241 = shalt.err (0)
        %s243 = sshll.u32 [#allocation2], 4
        %s244 = int_to_ptr.vmem [resolvable:$true] %s243
        %246 = dma.hbm_to_vmem [thread:$0]  %s235, 16, %s244, [#allocation3]
        %s247 = sadd.s32 %s228, 1
        %s248 = sld [smem:[#allocation5 + %s247]]
        %p249 = scmp.gt.s32.totalorder %s248, 0
        %s250 = scalar_select %p249, %s248, 0
        %p251 = scmp.lt.s32.totalorder %s250, 63
        %s252 = scalar_select %p251, %s250, 63
        %s253 = smul.addr %s252, 16
        %s254 = scalar_lea.hbm %s2, %s253
        %s255 = scalar_lea.vmem [#allocation2], 1
        %s256 = scalar_lea.sflag [#allocation3], 1
        // Predicated region
        $region45: #{tpu_custom_call.1} parent=39 // pred_check
          _
        $region46: #{tpu_custom_call.1} parent=39 // pred_check_branch
          %258 = sbr.rel target = $region48
        $region47: #{tpu_custom_call.1} parent=39 // pred_region
          %259 = sst [smem:[#allocation10]] [#allocation13]
          %260 = sst [smem:[#allocation11]] [#allocation12]
        $region48: #{tpu_custom_call.1} parent=39 // pred_fallthru
          _
        %262 = shalt.err (0)
        %s264 = sshll.u32 %s255, 4
        %s265 = int_to_ptr.vmem [resolvable:$true] %s264
        %267 = dma.hbm_to_vmem [thread:$0]  %s254, 16, %s265, %s256
        %s268 = sadd.s32 %s228, 2
        %s269 = sld [smem:[#allocation5 + %s268]]
        %p270 = scmp.gt.s32.totalorder %s269, 0
        %s271 = scalar_select %p270, %s269, 0
        %p272 = scmp.lt.s32.totalorder %s271, 63
        %s273 = scalar_select %p272, %s271, 63
        %s274 = smul.addr %s273, 16
        %s275 = scalar_lea.hbm %s2, %s274
        %s276 = scalar_lea.vmem [#allocation2], 2
        %s277 = scalar_lea.sflag [#allocation3], 2
        // Predicated region
        $region49: #{tpu_custom_call.1} parent=39 // pred_check
          _
        $region50: #{tpu_custom_call.1} parent=39 // pred_check_branch
          %279 = sbr.rel target = $region52
        $region51: #{tpu_custom_call.1} parent=39 // pred_region
          %280 = sst [smem:[#allocation10]] [#allocation15]
          %281 = sst [smem:[#allocation11]] [#allocation14]
        $region52: #{tpu_custom_call.1} parent=39 // pred_fallthru
          _
        %283 = shalt.err (0)
        %s285 = sshll.u32 %s276, 4
        %s286 = int_to_ptr.vmem [resolvable:$true] %s285
        %288 = dma.hbm_to_vmem [thread:$0]  %s275, 16, %s286, %s277
        %s289 = sadd.s32 %s228, 3
        %s290 = sld [smem:[#allocation5 + %s289]]
        %p291 = scmp.gt.s32.totalorder %s290, 0
        %s292 = scalar_select %p291, %s290, 0
        %p293 = scmp.lt.s32.totalorder %s292, 63
        %s294 = scalar_select %p293, %s292, 63
        %s295 = smul.addr %s294, 16
        %s296 = scalar_lea.hbm %s2, %s295
        %s297 = scalar_lea.vmem [#allocation2], 3
        %s298 = scalar_lea.sflag [#allocation3], 3
        // Predicated region
        $region53: #{tpu_custom_call.1} parent=39 // pred_check
          _
        $region54: #{tpu_custom_call.1} parent=39 // pred_check_branch
          %300 = sbr.rel target = $region56
        $region55: #{tpu_custom_call.1} parent=39 // pred_region
          %301 = sst [smem:[#allocation10]] [#allocation17]
          %302 = sst [smem:[#allocation11]] [#allocation16]
        $region56: #{tpu_custom_call.1} parent=39 // pred_fallthru
          _
        %304 = shalt.err (0)
        %s306 = sshll.u32 %s297, 4
        %s307 = int_to_ptr.vmem [resolvable:$true] %s306
        %309 = dma.hbm_to_vmem [thread:$0]  %s296, 16, %s307, %s298
        %s310 = sadd.s32 %s228, 4
        %s311 = sld [smem:[#allocation5 + %s310]]
        %p312 = scmp.gt.s32.totalorder %s311, 0
        %s313 = scalar_select %p312, %s311, 0
        %p314 = scmp.lt.s32.totalorder %s313, 63
        %s315 = scalar_select %p314, %s313, 63
        %s316 = smul.addr %s315, 16
        %s317 = scalar_lea.hbm %s2, %s316
        %s318 = scalar_lea.vmem [#allocation2], 4
        %s319 = scalar_lea.sflag [#allocation3], 4
        // Predicated region
        $region57: #{tpu_custom_call.1} parent=39 // pred_check
          _
        $region58: #{tpu_custom_call.1} parent=39 // pred_check_branch
          %321 = sbr.rel target = $region60
        $region59: #{tpu_custom_call.1} parent=39 // pred_region
          %322 = sst [smem:[#allocation10]] [#allocation19]
          %323 = sst [smem:[#allocation11]] [#allocation18]
        $region60: #{tpu_custom_call.1} parent=39 // pred_fallthru
          _
        %325 = shalt.err (0)
        %s327 = sshll.u32 %s318, 4
        %s328 = int_to_ptr.vmem [resolvable:$true] %s327
        %330 = dma.hbm_to_vmem [thread:$0]  %s317, 16, %s328, %s319
        %s331 = sadd.s32 %s228, 5
        %s332 = sld [smem:[#allocation5 + %s331]]
        %p333 = scmp.gt.s32.totalorder %s332, 0
        %s334 = scalar_select %p333, %s332, 0
        %p335 = scmp.lt.s32.totalorder %s334, 63
        %s336 = scalar_select %p335, %s334, 63
        %s337 = smul.addr %s336, 16
        %s338 = scalar_lea.hbm %s2, %s337
        %s339 = scalar_lea.vmem [#allocation2], 5
        %s340 = scalar_lea.sflag [#allocation3], 5
        // Predicated region
        $region61: #{tpu_custom_call.1} parent=39 // pred_check
          _
        $region62: #{tpu_custom_call.1} parent=39 // pred_check_branch
          %342 = sbr.rel target = $region64
        $region63: #{tpu_custom_call.1} parent=39 // pred_region
          %343 = sst [smem:[#allocation10]] [#allocation21]
          %344 = sst [smem:[#allocation11]] [#allocation20]
        $region64: #{tpu_custom_call.1} parent=39 // pred_fallthru
          _
        %346 = shalt.err (0)
        %s348 = sshll.u32 %s339, 4
        %s349 = int_to_ptr.vmem [resolvable:$true] %s348
        %351 = dma.hbm_to_vmem [thread:$0]  %s338, 16, %s349, %s340
        %s352 = sadd.s32 %s228, 6
        %s353 = sld [smem:[#allocation5 + %s352]]
        %p354 = scmp.gt.s32.totalorder %s353, 0
        %s355 = scalar_select %p354, %s353, 0
        %p356 = scmp.lt.s32.totalorder %s355, 63
        %s357 = scalar_select %p356, %s355, 63
        %s358 = smul.addr %s357, 16
        %s359 = scalar_lea.hbm %s2, %s358
        %s360 = scalar_lea.vmem [#allocation2], 6
        %s361 = scalar_lea.sflag [#allocation3], 6
        // Predicated region
        $region65: #{tpu_custom_call.1} parent=39 // pred_check
          _
        $region66: #{tpu_custom_call.1} parent=39 // pred_check_branch
          %363 = sbr.rel target = $region68
        $region67: #{tpu_custom_call.1} parent=39 // pred_region
          %364 = sst [smem:[#allocation10]] [#allocation23]
          %365 = sst [smem:[#allocation11]] [#allocation22]
        $region68: #{tpu_custom_call.1} parent=39 // pred_fallthru
          _
        %367 = shalt.err (0)
        %s369 = sshll.u32 %s360, 4
        %s370 = int_to_ptr.vmem [resolvable:$true] %s369
        %372 = dma.hbm_to_vmem [thread:$0]  %s359, 16, %s370, %s361
        %s373 = sadd.s32 %s228, 7
        %s374 = sld [smem:[#allocation5 + %s373]]
        %p375 = scmp.gt.s32.totalorder %s374, 0
        %s376 = scalar_select %p375, %s374, 0
        %p377 = scmp.lt.s32.totalorder %s376, 63
        %s378 = scalar_select %p377, %s376, 63
        %s379 = smul.addr %s378, 16
        %s380 = scalar_lea.hbm %s2, %s379
        %s381 = scalar_lea.vmem [#allocation2], 7
        %s382 = scalar_lea.sflag [#allocation3], 7
        // Predicated region
        $region69: #{tpu_custom_call.1} parent=39 // pred_check
          _
        $region70: #{tpu_custom_call.1} parent=39 // pred_check_branch
          %384 = sbr.rel target = $region72
        $region71: #{tpu_custom_call.1} parent=39 // pred_region
          %385 = sst [smem:[#allocation10]] [#allocation25]
          %386 = sst [smem:[#allocation11]] [#allocation24]
        $region72: #{tpu_custom_call.1} parent=39 // pred_fallthru
          _
        %388 = shalt.err (0)
        %s390 = sshll.u32 %s381, 4
        %s391 = int_to_ptr.vmem [resolvable:$true] %s390
        %393 = dma.hbm_to_vmem [thread:$0]  %s380, 16, %s391, %s382
        %v394 = vld [vmem:[%s227] sm:$0xff]
        %v395 = vld [vmem:[%s3] sm:$0xff]
        %vm396 = vcmp.eq.s32.totalorder %v394, 0
        %v397 = vsel %vm396, 1, 0
        %v398 = vcvt.s32.f32 %v397
        %400 = vset.pattern.permute.xlu0 0
        %401 = vperm.xlu0 %400, %v398
        %v402 = vpop.permute.xlu0 %401
        %v404 = vlaneseq
        %v405 = vshrl.u32 %v404, 7
        %v406 = vsub.s32 0, %v405
        %v407 = vrot.slane %v395, %v406
        %v408 = vmul.f32 %v402, %v407
        %vm409 = vcmp.eq.s32.totalorder %v394, 1
        %v410 = vsel %vm409, 1, 0
        %v411 = vcvt.s32.f32 %v410
        %413 = vset.pattern.permute.xlu0 0
        %414 = vperm.xlu0 %413, %v411
        %v415 = vpop.permute.xlu0 %414
        %v417 = vlaneseq
        %v418 = vshrl.u32 %v417, 7
        %v419 = vsub.s32 1, %v418
        %v420 = vrot.slane %v395, %v419
        %v421 = vmul.f32 %v415, %v420
        %v422 = vadd.f32 %v408, %v421
        %vm423 = vcmp.eq.s32.totalorder %v394, 2
        %v424 = vsel %vm423, 1, 0
        %v425 = vcvt.s32.f32 %v424
        %427 = vset.pattern.permute.xlu0 0
        %428 = vperm.xlu0 %427, %v425
        %v429 = vpop.permute.xlu0 %428
        %v431 = vlaneseq
        %v432 = vshrl.u32 %v431, 7
        %v433 = vsub.s32 2, %v432
        %v434 = vrot.slane %v395, %v433
        %v435 = vmul.f32 %v429, %v434
        %v436 = vadd.f32 %v422, %v435
        %v437 = vld [vmem:[%s4] sm:$0xff]
        %v438 = vadd.f32 %v436, %v437
        %s439 = smul.u32 1, 1
        %s440 = sshll.u32 %s439, 4
        %441 = dma.done [#allocation3], %s440
        %s442 = sshll.u32 %s439, 4
        %443 = dma.done %s256, %s442
        %s444 = sshll.u32 %s439, 4
        %445 = dma.done %s277, %s444
        %s446 = sshll.u32 %s439, 4
        %447 = dma.done %s298, %s446
        %s448 = sshll.u32 %s439, 4
        %449 = dma.done %s319, %s448
        %s450 = sshll.u32 %s439, 4
        %451 = dma.done %s340, %s450
        %s452 = sshll.u32 %s439, 4
        %453 = dma.done %s361, %s452
        %s454 = sshll.u32 %s439, 4
        %455 = dma.done %s382, %s454
        %v456 = vld [vmem:[#allocation2] sm:$0xff]
        %v457 = vadd.f32 %v456, %v438
        %458 = vadd.xlane.f32.xlu0 %v457
        %v459 = vpop.xlane.xlu0 %458
        %v460 = vrcp.pop 128.0
        %v461 = vmul.f32 %v459, %v460
        %v462 = vsub.f32 %v457, %v461
        %v463 = vmul.f32 %v462, %v462
        %464 = vadd.xlane.f32.xlu0 %v463
        %v465 = vpop.xlane.xlu0 %464
        %v466 = vmul.f32 %v465, 0.007874016
        %v467 = vrsqrt.pop %v466
        %v468 = vmul.f32 %v466, %v467
        %vm469 = vcmp.eq.f32.partialorder %v466, inf
        %v470 = vsel %vm469, %v466, %v468
        %vm471 = vcmp.eq.f32.partialorder %v466, 0.0
        %v472 = vand.u32 %v466, 2147483648
        %v473 = vsel %vm471, %v472, %v470
        %v474 = vadd.f32 %v473, 1e-06
        %v475 = vrcp.pop %v474
        %v476 = vld [vmem:[%s5] sm:$0x1]
        %v477 = vmul.f32 %v462, %v475
        %v479 = vlaneseq
        %v480 = vshrl.u32 %v479, 7
        %v481 = vsub.s32 0, %v480
        %v482 = vrot.slane %v476, %v481
        %v484 = vmul.f32 %v482, %v477
        %v485 = vld [vmem:[%s6] sm:$0x1]
        %v487 = vlaneseq
        %v488 = vshrl.u32 %v487, 7
        %v489 = vsub.s32 0, %v488
        %v490 = vrot.slane %v485, %v489
        %v492 = vadd.f32 %v484, %v490
        %493 = vst [vmem:[%s223] sm:$0xff] %v492
        %s494 = sand.u32 %s145, 1
        %s495 = scalar_lea.sflag [#allocation7], %s494
        %s496 = sand.u32 %s145, 1
        %s497 = smul.addr %s496, 8
        %s498 = scalar_lea.vmem [#allocation6], %s497
        // Predicated region
        $region73: #{tpu_custom_call.1} parent=39 // pred_check
          %p499 = pneg %p155
        $region74: #{tpu_custom_call.1} parent=39 // pred_check_branch
          %501 = sbr.rel (%p499) target = $region76
        $region75: #{tpu_custom_call.1} parent=39 // pred_region
          %s503 = ssub.s32 128, 128
          %504 = vsyncadd %s495, %s503
          %s505 = smul.addr %s27, 128
          %s506 = scalar_lea.hbm %s7, %s505
          %s508 = sshll.u32 %s498, 4
          %s509 = int_to_ptr.vmem [resolvable:$true] %s508
          %511 = dma.vmem_to_hbm [thread:$0]  %s509, 128, %s506, %s495
        $region76: #{tpu_custom_call.1} parent=39 // pred_fallthru
          _
      $region40: #{tpu_custom_call.1} parent=5 // pred_fallthru
        _
      %p512 = scmp.le.s32.totalorder 2, %s22
      // Predicated region
      $region77: #{tpu_custom_call.1} parent=5 // pred_check
        %p513 = pneg %p512
      $region78: #{tpu_custom_call.1} parent=5 // pred_check_branch
        %515 = sbr.rel (%p513) target = $region80
      $region79: #{tpu_custom_call.1} parent=5 // pred_region
        %s516 = ssub.s32 %s22, 2
        // Predicated region
        $region81: #{tpu_custom_call.1} parent=79 // pred_check
          %p517 = pneg %p161
        $region82: #{tpu_custom_call.1} parent=79 // pred_check_branch
          %519 = sbr.rel (%p517) target = $region84
        $region83: #{tpu_custom_call.1} parent=79 // pred_region
          %s520 = sand.u32 %s146, 1
          %s521 = scalar_lea.sflag [#allocation7], %s520
          %s522 = sand.u32 %s146, 1
          %s523 = smul.addr %s522, 8
          %s524 = scalar_lea.vmem [#allocation6], %s523
          %525 = dma.done %s521, 128
        $region84: #{tpu_custom_call.1} parent=79 // pred_fallthru
          _
      $region80: #{tpu_custom_call.1} parent=5 // pred_fallthru
        _
    $region6: #{tpu_custom_call.1} parent=1 // loop_footer
      %s26 = sadd.s32 1, %s22
    $region7: #{tpu_custom_call.1} parent=1 // loop_footer_branch
      %21 = sbr.rel target = $region3
    $region8: #{tpu_custom_call.1} parent=1 // loop_exit
      _
    %526 = vsyncpa [#allocation7], 1
    %s527 = scalar_lea.sflag [#allocation7], 1
    %528 = vsyncpa %s527, 1
  %529 = vsyncmov [#allocation3]
  %s530 = vpop.sfrf %529
  %p531 = scmp.eq.s32.totalorder %s530, 0
  %p532 = pneg %p531
  %534 = shalt.err (%p532)
  %s535 = scalar_lea.sflag [#allocation3], 1
  %536 = vsyncmov %s535
  %s537 = vpop.sfrf %536
  %p538 = scmp.eq.s32.totalorder %s537, 0
  %p539 = pneg %p538
  %541 = shalt.err (%p539)
  %s542 = scalar_lea.sflag [#allocation3], 2
  %543 = vsyncmov %s542
  %s544 = vpop.sfrf %543
  %p545 = scmp.eq.s32.totalorder %s544, 0
  %p546 = pneg %p545
  %548 = shalt.err (%p546)
  %s549 = scalar_lea.sflag [#allocation3], 3
  %550 = vsyncmov %s549
  %s551 = vpop.sfrf %550
  %p552 = scmp.eq.s32.totalorder %s551, 0
  %p553 = pneg %p552
  %555 = shalt.err (%p553)
  %s556 = scalar_lea.sflag [#allocation3], 4
  %557 = vsyncmov %s556
  %s558 = vpop.sfrf %557
  %p559 = scmp.eq.s32.totalorder %s558, 0
  %p560 = pneg %p559
  %562 = shalt.err (%p560)
  %s563 = scalar_lea.sflag [#allocation3], 5
  %564 = vsyncmov %s563
  %s565 = vpop.sfrf %564
  %p566 = scmp.eq.s32.totalorder %s565, 0
  %p567 = pneg %p566
  %569 = shalt.err (%p567)
  %s570 = scalar_lea.sflag [#allocation3], 6
  %571 = vsyncmov %s570
  %s572 = vpop.sfrf %571
  %p573 = scmp.eq.s32.totalorder %s572, 0
  %p574 = pneg %p573
  %576 = shalt.err (%p574)
  %s577 = scalar_lea.sflag [#allocation3], 7
  %578 = vsyncmov %s577
  %s579 = vpop.sfrf %578
  %p580 = scmp.eq.s32.totalorder %s579, 0
  %p581 = pneg %p580
  %583 = shalt.err (%p581)

</llo_original>
